<compile_context>
chip_gen: v7x
topology: tpu7x:2x2x1
jax: 0.10.0
libtpu: 0.0.40
codegen_flags: <defaults>
</compile_context>

<pallas_src>
import functools
import math

import jax
import jax.numpy as jnp
from jax.experimental import pallas as pl
from jax.experimental.pallas import tpu as pltpu

LOG_STD_MIN = -20.0
LOG_STD_MAX = 2.0
_HALF_LOG_2PI = 0.5 * math.log(2.0 * math.pi)
_LOG2 = math.log(2.0)


def _softplus(z):
    # numerically stable softplus, elementwise (VPU/EUP)
    return jnp.maximum(z, 0.0) + jnp.log1p(jnp.exp(-jnp.abs(z)))


def _actor_kernel(se_ref, w1_ref, w2_ref, wh_ref, b_ref, out_ref,
                  *, obs, act, h1, h2):
    # packed input: state | eps  -> [TB, obs + act] f32
    x = se_ref[:, :obs]                         # [TB, obs]
    eps = se_ref[:, obs:obs + act]              # [TB, act]

    # packed biases (f32): b1 | b2 | (bmu | bls)
    b1 = b_ref[:, :h1]
    b2 = b_ref[:, h1:h1 + h2]
    bh = b_ref[:, h1 + h2:h1 + h2 + 2 * act]

    # act_net: Linear -> ReLU -> Linear -> ReLU  (bf16 MXU inputs, f32 accumulate)
    z1 = jnp.dot(x.astype(w1_ref.dtype), w1_ref[...],
                 preferred_element_type=jnp.float32) + b1
    a1 = jnp.maximum(z1, 0.0)
    z2 = jnp.dot(a1.astype(w2_ref.dtype), w2_ref[...],
                 preferred_element_type=jnp.float32) + b2
    a2 = jnp.maximum(z2, 0.0)

    # fused mean / log_std heads: single [h2, 2A] matmul
    zh = jnp.dot(a2.astype(wh_ref.dtype), wh_ref[...],
                 preferred_element_type=jnp.float32) + bh       # [TB, 2A]
    mu = zh[:, :act]
    log_std = zh[:, act:2 * act]

    # log_std squashing to [LOG_STD_MIN, LOG_STD_MAX]
    log_std = jnp.tanh(log_std)
    log_std = LOG_STD_MIN + 0.5 * (LOG_STD_MAX - LOG_STD_MIN) * (log_std + 1.0)
    std = jnp.exp(log_std)

    # rsample: x_base = mu + std * eps ; sample = tanh(x_base) ; mean = tanh(mu)
    x_base = mu + std * eps
    sample = jnp.tanh(x_base)
    mean = jnp.tanh(mu)          # back-to-back tanh keeps the EUP FIFO full

    # log_prob of SquashedNormal at `sample` (cache_size=1 => uses cached x_base):
    #   Normal(mu, std).log_prob(x_base) = -0.5*eps^2 - log_std - 0.5*log(2*pi)
    #   tanh log|det J|(x_base)          = 2*(log 2 - x_base - softplus(-2*x_base))
    base_lp = -0.5 * eps * eps - log_std - _HALF_LOG_2PI
    log_det = 2.0 * (_LOG2 - x_base - _softplus(-2.0 * x_base))
    log_pi = jnp.sum(base_lp - log_det, axis=-1, keepdims=True)   # [TB, 1]

    # single lane-dense output slab: sample | mean | log_pi | zero-pad
    out_ref[...] = jnp.zeros_like(out_ref)
    out_ref[:, :act] = sample
    out_ref[:, act:2 * act] = mean
    out_ref[:, 2 * act:2 * act + 1] = log_pi


def actor_forward(state, eps, params, *, block_b=128, weight_dtype=jnp.bfloat16):
    """state: [B, obs] f32, eps: [B, A] f32 (N(0,1) noise), params: weight dict.

    Returns (sample [B, A], log_pi [B, 1], mean [B, A]), all f32.
    """
    B, obs = state.shape
    act = params["wmu"].shape[1]
    h1 = params["w1"].shape[1]
    h2 = params["w2"].shape[1]

    # --- host-side packing: fewer, larger DMAs ---
    se = jnp.concatenate([state, eps], axis=1)                           # [B, obs+A]
    w1 = params["w1"].astype(weight_dtype)
    w2 = params["w2"].astype(weight_dtype)
    wh = jnp.concatenate([params["wmu"], params["wls"]], axis=1).astype(weight_dtype)
    bias = jnp.concatenate([params["b1"], params["b2"],
                            params["bmu"], params["bls"]], axis=1).astype(jnp.float32)

    out_w = max(128, ((2 * act + 1 + 127) // 128) * 128)   # lane-dense output width

    # --- batch tiling: whole batch in one block if small, else TB-row blocks ---
    if B <= block_b:
        tb = B
    else:
        assert B % block_b == 0 and block_b % 8 == 0
        tb = block_b
    grid = (B // tb,)

    kernel = functools.partial(_actor_kernel, obs=obs, act=act, h1=h1, h2=h2)

    flops = 2 * B * (obs * h1 + h1 * h2 + h2 * 2 * act)
    transcendentals = 6 * B * act
    bytes_accessed = (se.size * se.dtype.itemsize
                      + w1.size * w1.dtype.itemsize
                      + w2.size * w2.dtype.itemsize
                      + wh.size * wh.dtype.itemsize
                      + bias.size * bias.dtype.itemsize
                      + B * out_w * 4)

    packed = pl.pallas_call(
        kernel,
        out_shape=jax.ShapeDtypeStruct((B, out_w), jnp.float32),
        grid_spec=pltpu.PrefetchScalarGridSpec(
            num_scalar_prefetch=0,
            grid=grid,
            in_specs=[
                pl.BlockSpec((tb, obs + act), lambda i: (i, 0)),          # state|eps
                pl.BlockSpec((obs, h1), lambda i: (0, 0)),                # w1
                pl.BlockSpec((h1, h2), lambda i: (0, 0)),                 # w2
                pl.BlockSpec((h2, 2 * act), lambda i: (0, 0)),            # fused heads
                pl.BlockSpec((1, h1 + h2 + 2 * act), lambda i: (0, 0)),   # packed biases
            ],
            out_specs=pl.BlockSpec((tb, out_w), lambda i: (i, 0)),
        ),
        compiler_params=pltpu.CompilerParams(
            dimension_semantics=("parallel",)),
        cost_estimate=pl.CostEstimate(flops=flops,
                                      transcendentals=transcendentals,
                                      bytes_accessed=bytes_accessed),
    )(se, w1, w2, wh, bias)

    sample = packed[:, :act]
    mean = packed[:, act:2 * act]
    log_pi = packed[:, 2 * act:2 * act + 1]
    return sample, log_pi, mean


def reference_forward(state, eps, params, weight_dtype=jnp.bfloat16):
    """Pure-JAX reference mirroring the kernel's bf16 weight/activation quantization."""
    def q(x):
        return x.astype(weight_dtype).astype(jnp.float32)

    a1 = jnp.maximum(jnp.dot(q(state), q(params["w1"])) + params["b1"], 0.0)
    a2 = jnp.maximum(jnp.dot(q(a1), q(params["w2"])) + params["b2"], 0.0)
    mu = jnp.dot(q(a2), q(params["wmu"])) + params["bmu"]
    log_std = jnp.dot(q(a2), q(params["wls"])) + params["bls"]
    log_std = jnp.tanh(log_std)
    log_std = LOG_STD_MIN + 0.5 * (LOG_STD_MAX - LOG_STD_MIN) * (log_std + 1.0)
    std = jnp.exp(log_std)
    x_base = mu + std * eps
    sample = jnp.tanh(x_base)
    base_lp = -0.5 * eps * eps - log_std - _HALF_LOG_2PI
    log_det = 2.0 * (_LOG2 - x_base - _softplus(-2.0 * x_base))
    log_pi = jnp.sum(base_lp - log_det, axis=-1, keepdims=True)
    return sample, log_pi, jnp.tanh(mu)


def init_params(key, obs_size, num_actions, hidden_size):
    """Deterministic PyTorch-style U(-1/sqrt(fan_in), 1/sqrt(fan_in)) init."""
    def linear(key, fan_in, fan_out):
        kw, kb = jax.random.split(key)
        bound = 1.0 / jnp.sqrt(fan_in)
        w = jax.random.uniform(kw, (fan_in, fan_out), jnp.float32, -bound, bound)
        b = jax.random.uniform(kb, (1, fan_out), jnp.float32, -bound, bound)
        return w, b

    k1, k2, k3, k4 = jax.random.split(key, 4)
    w1, b1 = linear(k1, obs_size, hidden_size[0])
    w2, b2 = linear(k2, hidden_size[0], hidden_size[1])
    wmu, bmu = linear(k3, hidden_size[1], num_actions)
    wls, bls = linear(k4, hidden_size[1], num_actions)
    return dict(w1=w1, b1=b1, w2=w2, b2=b2, wmu=wmu, bmu=bmu, wls=wls, bls=bls)


if __name__ == "__main__":
    B = 8            # batch
    OBS = 32         # observation_size
    A = 8            # num_actions
    HIDDEN = [64, 64]

    key = jax.random.PRNGKey(0)
    k_state, k_eps, k_params = jax.random.split(key, 3)

    state = jax.random.normal(k_state, (B, OBS), jnp.float32)
    eps = jax.random.normal(k_eps, (B, A), jnp.float32)   # rsample noise
    params = init_params(k_params, OBS, A, HIDDEN)

    sample, log_pi, mean = actor_forward(state, eps, params)
    jax.block_until_ready((sample, log_pi, mean))

    # pure-JAX reference (same bf16 weight quantization) for a sanity check
    r_sample, r_log_pi, r_mean = reference_forward(state, eps, params)

    assert sample.shape == (B, A)
    assert log_pi.shape == (B, 1)
    assert mean.shape == (B, A)
    assert bool(jnp.all(jnp.isfinite(sample)))
    assert bool(jnp.all(jnp.isfinite(log_pi)))
    assert bool(jnp.all(jnp.abs(sample) <= 1.0))
    assert bool(jnp.all(jnp.abs(mean) <= 1.0))
    assert bool(jnp.allclose(sample, r_sample, atol=1e-2, rtol=1e-2))
    assert bool(jnp.allclose(mean, r_mean, atol=1e-2, rtol=1e-2))
    assert bool(jnp.allclose(log_pi, r_log_pi, atol=5e-2, rtol=1e-2))

    print("KERNEL_OK")
</pallas_src>

<mosaic_0001>
module attributes {stable_mosaic.version = 11 : i64} {
  func.func @_actor_kernel(%arg0: i32, %arg1: memref<8x40xf32, #tpu.memory_space<vmem>>, %arg2: memref<32x64xbf16, #tpu.memory_space<vmem>>, %arg3: memref<64x64xbf16, #tpu.memory_space<vmem>>, %arg4: memref<64x16xbf16, #tpu.memory_space<vmem>>, %arg5: memref<1x144xf32, #tpu.memory_space<vmem>>, %arg6: memref<8x128xf32, #tpu.memory_space<vmem>>) attributes {dimension_semantics = [#tpu.dimension_semantics<parallel>], iteration_bounds = array<i64: 1>, scalar_prefetch = 0 : i64, scratch_operands = 0 : i64, tpu.core_type = #tpu.core_type<tc>, window_params = [{transform_indices = @transform_0, window_bounds = array<i64: 8, 40>}, {pipeline_mode = #tpu.pipeline_mode<synchronous>, transform_indices = @transform_1, window_bounds = array<i64: 32, 64>}, {pipeline_mode = #tpu.pipeline_mode<synchronous>, transform_indices = @transform_2, window_bounds = array<i64: 64, 64>}, {pipeline_mode = #tpu.pipeline_mode<synchronous>, transform_indices = @transform_3, window_bounds = array<i64: 64, 16>}, {pipeline_mode = #tpu.pipeline_mode<synchronous>, transform_indices = @transform_4, window_bounds = array<i64: 1, 144>}, {transform_indices = @transform_5, window_bounds = array<i64: 8, 128>}]} {
    %c0 = arith.constant 0 : index
    %c0_0 = arith.constant 0 : index
    %0 = vector.load %arg1[%c0, %c0_0] : memref<8x40xf32, #tpu.memory_space<vmem>>, vector<8x32xf32>
    %c0_1 = arith.constant 0 : index
    %c32 = arith.constant 32 : index
    %1 = vector.load %arg1[%c0_1, %c32] : memref<8x40xf32, #tpu.memory_space<vmem>>, vector<8x8xf32>
    %c0_2 = arith.constant 0 : index
    %c0_3 = arith.constant 0 : index
    %2 = vector.load %arg5[%c0_2, %c0_3] : memref<1x144xf32, #tpu.memory_space<vmem>>, vector<1x64xf32>
    %c0_4 = arith.constant 0 : index
    %c64 = arith.constant 64 : index
    %3 = vector.load %arg5[%c0_4, %c64] : memref<1x144xf32, #tpu.memory_space<vmem>>, vector<1x64xf32>
    %c0_5 = arith.constant 0 : index
    %c128 = arith.constant 128 : index
    %4 = vector.load %arg5[%c0_5, %c128] : memref<1x144xf32, #tpu.memory_space<vmem>>, vector<1x16xf32>
    %5 = arith.truncf %0 : vector<8x32xf32> to vector<8x32xbf16>
    %c0_6 = arith.constant 0 : index
    %c0_7 = arith.constant 0 : index
    %6 = vector.load %arg2[%c0_6, %c0_7] : memref<32x64xbf16, #tpu.memory_space<vmem>>, vector<32x64xbf16>
    %cst = arith.constant dense<0.000000e+00> : vector<8x64xf32>
    %7 = tpu.matmul %5, %6, %cst {dimension_numbers = #tpu.dot_dimension_numbers<[1], [0], [0], [1], [0, 0, 1, 1], [], []>} : vector<8x32xbf16>, vector<32x64xbf16>, vector<8x64xf32> -> vector<8x64xf32>
    %8 = vector.broadcast %2 : vector<1x64xf32> to vector<8x64xf32>
    %9 = arith.addf %7, %8 : vector<8x64xf32>
    %cst_8 = arith.constant 0.000000e+00 : f32
    %10 = vector.broadcast %cst_8 : f32 to vector<8x64xf32>
    %11 = arith.maximumf %9, %10 : vector<8x64xf32>
    %12 = arith.truncf %11 : vector<8x64xf32> to vector<8x64xbf16>
    %c0_9 = arith.constant 0 : index
    %c0_10 = arith.constant 0 : index
    %13 = vector.load %arg3[%c0_9, %c0_10] : memref<64x64xbf16, #tpu.memory_space<vmem>>, vector<64x64xbf16>
    %cst_11 = arith.constant dense<0.000000e+00> : vector<8x64xf32>
    %14 = tpu.matmul %12, %13, %cst_11 {dimension_numbers = #tpu.dot_dimension_numbers<[1], [0], [0], [1], [0, 0, 1, 1], [], []>} : vector<8x64xbf16>, vector<64x64xbf16>, vector<8x64xf32> -> vector<8x64xf32>
    %15 = vector.broadcast %3 : vector<1x64xf32> to vector<8x64xf32>
    %16 = arith.addf %14, %15 : vector<8x64xf32>
    %cst_12 = arith.constant 0.000000e+00 : f32
    %17 = vector.broadcast %cst_12 : f32 to vector<8x64xf32>
    %18 = arith.maximumf %16, %17 : vector<8x64xf32>
    %19 = arith.truncf %18 : vector<8x64xf32> to vector<8x64xbf16>
    %c0_13 = arith.constant 0 : index
    %c0_14 = arith.constant 0 : index
    %20 = vector.load %arg4[%c0_13, %c0_14] : memref<64x16xbf16, #tpu.memory_space<vmem>>, vector<64x16xbf16>
    %cst_15 = arith.constant dense<0.000000e+00> : vector<8x16xf32>
    %21 = tpu.matmul %19, %20, %cst_15 {dimension_numbers = #tpu.dot_dimension_numbers<[1], [0], [0], [1], [0, 0, 1, 1], [], []>} : vector<8x64xbf16>, vector<64x16xbf16>, vector<8x16xf32> -> vector<8x16xf32>
    %22 = vector.broadcast %4 : vector<1x16xf32> to vector<8x16xf32>
    %23 = arith.addf %21, %22 : vector<8x16xf32>
    %24 = vector.extract_strided_slice %23 {offsets = [0, 0], sizes = [8, 8], strides = [1, 1]} : vector<8x16xf32> to vector<8x8xf32>
    %25 = vector.extract_strided_slice %23 {offsets = [0, 8], sizes = [8, 8], strides = [1, 1]} : vector<8x16xf32> to vector<8x8xf32>
    %26 = math.tanh %25 : vector<8x8xf32>
    %cst_16 = arith.constant 1.000000e+00 : f32
    %27 = vector.broadcast %cst_16 : f32 to vector<8x8xf32>
    %28 = arith.addf %26, %27 : vector<8x8xf32>
    %cst_17 = arith.constant 1.100000e+01 : f32
    %29 = vector.broadcast %cst_17 : f32 to vector<8x8xf32>
    %30 = arith.mulf %29, %28 : vector<8x8xf32>
    %cst_18 = arith.constant -2.000000e+01 : f32
    %31 = vector.broadcast %cst_18 : f32 to vector<8x8xf32>
    %32 = arith.addf %31, %30 : vector<8x8xf32>
    %33 = math.exp %32 : vector<8x8xf32>
    %34 = arith.mulf %33, %1 : vector<8x8xf32>
    %35 = arith.addf %24, %34 : vector<8x8xf32>
    %36 = math.tanh %35 : vector<8x8xf32>
    %37 = math.tanh %24 : vector<8x8xf32>
    %cst_19 = arith.constant -5.000000e-01 : f32
    %38 = vector.broadcast %cst_19 : f32 to vector<8x8xf32>
    %39 = arith.mulf %38, %1 : vector<8x8xf32>
    %40 = arith.mulf %39, %1 : vector<8x8xf32>
    %41 = arith.subf %40, %32 : vector<8x8xf32>
    %cst_20 = arith.constant 0.918938517 : f32
    %42 = vector.broadcast %cst_20 : f32 to vector<8x8xf32>
    %43 = arith.subf %41, %42 : vector<8x8xf32>
    %cst_21 = arith.constant 0.693147182 : f32
    %44 = vector.broadcast %cst_21 : f32 to vector<8x8xf32>
    %45 = arith.subf %44, %35 : vector<8x8xf32>
    %cst_22 = arith.constant -2.000000e+00 : f32
    %46 = vector.broadcast %cst_22 : f32 to vector<8x8xf32>
    %47 = arith.mulf %46, %35 : vector<8x8xf32>
    %cst_23 = arith.constant 0.000000e+00 : f32
    %48 = vector.broadcast %cst_23 : f32 to vector<8x8xf32>
    %49 = arith.maximumf %47, %48 : vector<8x8xf32>
    %50 = math.absf %47 : vector<8x8xf32>
    %cst_24 = arith.constant 0.000000e+00 : f32
    %51 = vector.broadcast %cst_24 : f32 to vector<8x8xf32>
    %52 = arith.subf %51, %50 : vector<8x8xf32>
    %53 = math.exp %52 : vector<8x8xf32>
    %54 = math.log1p %53 : vector<8x8xf32>
    %55 = arith.addf %49, %54 : vector<8x8xf32>
    %56 = arith.subf %45, %55 : vector<8x8xf32>
    %cst_25 = arith.constant 2.000000e+00 : f32
    %57 = vector.broadcast %cst_25 : f32 to vector<8x8xf32>
    %58 = arith.mulf %57, %56 : vector<8x8xf32>
    %59 = arith.subf %43, %58 : vector<8x8xf32>
    %cst_26 = arith.constant dense<0.000000e+00> : vector<8xf32>
    %60 = vector.multi_reduction <add>, %59, %cst_26 [1] : vector<8x8xf32> to vector<8xf32>
    %61 = vector.shape_cast %60 : vector<8xf32> to vector<8x1xf32>
    %cst_27 = arith.constant 0.000000e+00 : f32
    %62 = vector.broadcast %cst_27 : f32 to vector<8x128xf32>
    %c0_28 = arith.constant 0 : index
    %c0_29 = arith.constant 0 : index
    %63 = vector.load %arg6[%c0_28, %c0_29] : memref<8x128xf32, #tpu.memory_space<vmem>>, vector<8x128xf32>
    tpu.vector_store %arg6[%c0_28, %c0_29], %62 {strides = array<i32>} : memref<8x128xf32, #tpu.memory_space<vmem>>, vector<8x128xf32>,
    %c0_30 = arith.constant 0 : index
    %c0_31 = arith.constant 0 : index
    %64 = vector.load %arg6[%c0_30, %c0_31] : memref<8x128xf32, #tpu.memory_space<vmem>>, vector<8x8xf32>
    tpu.vector_store %arg6[%c0_30, %c0_31], %36 {strides = array<i32>} : memref<8x128xf32, #tpu.memory_space<vmem>>, vector<8x8xf32>,
    %c0_32 = arith.constant 0 : index
    %c8 = arith.constant 8 : index
    %65 = vector.load %arg6[%c0_32, %c8] : memref<8x128xf32, #tpu.memory_space<vmem>>, vector<8x8xf32>
    tpu.vector_store %arg6[%c0_32, %c8], %37 {strides = array<i32>} : memref<8x128xf32, #tpu.memory_space<vmem>>, vector<8x8xf32>,
    %c0_33 = arith.constant 0 : index
    %c16 = arith.constant 16 : index
    %66 = vector.load %arg6[%c0_33, %c16] : memref<8x128xf32, #tpu.memory_space<vmem>>, vector<8x1xf32>
    tpu.vector_store %arg6[%c0_33, %c16], %61 {strides = array<i32>} : memref<8x128xf32, #tpu.memory_space<vmem>>, vector<8x1xf32>,
    return
  }
  func.func @transform_0(%arg0: i32) -> (i32, i32) {
    %c0_i32 = arith.constant 0 : i32
    %c0_i32_0 = arith.constant 0 : i32
    return %arg0, %c0_i32 : i32, i32
  }
  func.func @transform_1(%arg0: i32) -> (i32, i32) {
    %c0_i32 = arith.constant 0 : i32
    %c0_i32_0 = arith.constant 0 : i32
    %c0_i32_1 = arith.constant 0 : i32
    return %c0_i32, %c0_i32_0 : i32, i32
  }
  func.func @transform_2(%arg0: i32) -> (i32, i32) {
    %c0_i32 = arith.constant 0 : i32
    %c0_i32_0 = arith.constant 0 : i32
    %c0_i32_1 = arith.constant 0 : i32
    return %c0_i32, %c0_i32_0 : i32, i32
  }
  func.func @transform_3(%arg0: i32) -> (i32, i32) {
    %c0_i32 = arith.constant 0 : i32
    %c0_i32_0 = arith.constant 0 : i32
    %c0_i32_1 = arith.constant 0 : i32
    return %c0_i32, %c0_i32_0 : i32, i32
  }
  func.func @transform_4(%arg0: i32) -> (i32, i32) {
    %c0_i32 = arith.constant 0 : i32
    %c0_i32_0 = arith.constant 0 : i32
    %c0_i32_1 = arith.constant 0 : i32
    return %c0_i32, %c0_i32_0 : i32, i32
  }
  func.func @transform_5(%arg0: i32) -> (i32, i32) {
    %c0_i32 = arith.constant 0 : i32
    %c0_i32_0 = arith.constant 0 : i32
    return %arg0, %c0_i32 : i32, i32
  }
}

</mosaic_0001>

<llo_original>
// kernel: tpu_custom_call.1
$region0: #{tpu_custom_call.1}
  #allocation0 [shape = 'u32[]', space=smem, size = 0x4, offset = 0x4, fixed_abs, tag = 'smem constant byte address 0x4 - core index']
  #allocation1 [shape = 'u32[144,128]{1,0:T(1,128)}', space=vmem, size = 0x12000, scoped, tag = 'internal scratch']
  %s0 = inlined_call_operand.vmem [shape: f32[8,40], index: 0, kind: input, shape index: {}]
  %s1 = inlined_call_operand.hbm [shape: bf16[32,64], index: 1, kind: input, shape index: {}]
  %s2 = inlined_call_operand.vmem [shape: bf16[64,64], index: 2, kind: input, shape index: {}]
  %s3 = inlined_call_operand.vmem [shape: bf16[64,16], index: 3, kind: input, shape index: {}]
  %s4 = inlined_call_operand.vmem [shape: f32[1,144], index: 4, kind: input, shape index: {}]
  %s5 = inlined_call_operand.hbm [shape: f32[8,128], index: 5, kind: output, shape index: {}]
  %s6 = sld [smem:[#allocation0]]
  $region34: #{tpu_custom_call.1} parent=0
    _
  %s8 = ssub.s32 1, %s6
  %s9 = scalar_select 0, %s8, %s6
  $region1: #{tpu_custom_call.1} parent=0
    #allocation2 [shape = 'u8[8192]{0}', space=vmem, size = 0x2000, scoped, tag = 'input window, operand 1, single buffered']
    #allocation3 [shape = 's32[1]{0}', space=sflag, size = 0x4, scoped, tag = 'scoped memory for tpu_custom_call.1']
    #allocation4 [shape = 's32[1]{0}', space=sflag, size = 0x4, scoped, tag = 'scoped memory for tpu_custom_call.1']
    #allocation5 [shape = 'u8[4096]{0}', space=vmem, size = 0x1000, scoped, tag = 'output window, operand 0, single buffered']
    %10 = vsyncpa [#allocation3], 0
    %11 = vsyncpa [#allocation4], 0
    // Predicated region
    $region2: #{tpu_custom_call.1} parent=1 // pred_check
      _
    $region3: #{tpu_custom_call.1} parent=1 // pred_check_branch
      %13 = sbr.rel (0) target = $region5
    $region4: #{tpu_custom_call.1} parent=1 // pred_region
      _
    $region5: #{tpu_custom_call.1} parent=1 // pred_fallthru
      _
    // Predicated region
    $region6: #{tpu_custom_call.1} parent=1 // pred_check
      _
    $region7: #{tpu_custom_call.1} parent=1 // pred_check_branch
      %15 = sbr.rel (0) target = $region9
    $region8: #{tpu_custom_call.1} parent=1 // pred_region
      %s17 = ssub.s32 256, 256
      %18 = vsyncadd [#allocation3], %s17
      %s19 = sshll.u32 [#allocation2], 4
      %s20 = int_to_ptr.vmem [resolvable:$true] %s19
      %25 = dma.hbm_to_vmem [thread:$0]  %s1, 256, %s20, [#allocation3], 64, 64, 4
    $region9: #{tpu_custom_call.1} parent=1 // pred_fallthru
      _
    // Predicated region
    $region10: #{tpu_custom_call.1} parent=1 // pred_check
      _
    $region11: #{tpu_custom_call.1} parent=1 // pred_check_branch
      %27 = sbr.rel (0) target = $region13
    $region12: #{tpu_custom_call.1} parent=1 // pred_region
      _
    $region13: #{tpu_custom_call.1} parent=1 // pred_fallthru
      _
    // Predicated region
    $region14: #{tpu_custom_call.1} parent=1 // pred_check
      _
    $region15: #{tpu_custom_call.1} parent=1 // pred_check_branch
      %29 = sbr.rel (0) target = $region17
    $region16: #{tpu_custom_call.1} parent=1 // pred_region
      _
    $region17: #{tpu_custom_call.1} parent=1 // pred_fallthru
      _
    // Predicated region
    $region18: #{tpu_custom_call.1} parent=1 // pred_check
      _
    $region19: #{tpu_custom_call.1} parent=1 // pred_check_branch
      %31 = sbr.rel (0) target = $region21
    $region20: #{tpu_custom_call.1} parent=1 // pred_region
      _
    $region21: #{tpu_custom_call.1} parent=1 // pred_fallthru
      _
    // Predicated region
    $region22: #{tpu_custom_call.1} parent=1 // pred_check
      _
    $region23: #{tpu_custom_call.1} parent=1 // pred_check_branch
      %33 = sbr.rel (0) target = $region25
    $region24: #{tpu_custom_call.1} parent=1 // pred_region
      %34 = dma.done [#allocation3], 256
    $region25: #{tpu_custom_call.1} parent=1 // pred_fallthru
      _
    %v36 = vld [vmem:[%s0] sm:$0xff]
    %v37 = vld [vmem:[%s4] sm:$0x1]
    %v38 = vld [vmem:[%s4 + $0x1] sm:$0x1]
    %v39 = vpack.c.bf16 %v36, %v36
    %v40 = vld [vmem:[#allocation2] sm:$0xf]
    %v41 = vld [vmem:[#allocation2 + $0x4] sm:$0xf]
    %v42 = vld [vmem:[#allocation2 + $0x8] sm:$0xf]
    %v43 = vld [vmem:[#allocation2 + $0xc] sm:$0xf]
    %v45 = vlaneseq
    %v46 = vshrl.u32 %v45, 7
    %v47 = vsub.s32 0, %v46
    %v48 = vrot.slane %v37, %v47
    %v54 = vunpack.c.l.b16 %v40
    %v55 = vunpack.c.l.b16 %v41
    %v56 = vunpack.c.l.b16 %v42
    %v57 = vunpack.c.l.b16 %v43
    %v58 = vpack.c.b16 %v55, %v54
    %v59 = vpack.c.b16 %v57, %v56
    %vm62 = vcmask 261120
    %v64 = vsel %vm62, %v39, 0
    %66 = vmatprep.subr.bf16.mxu0 0
    %67 = vmatpush1.bf16.msra.mxu0 %v58
    %68 = vmatprep.subr.bf16.mxu0 0
    %69 = vmatpush1.bf16.msra.mxu0 %v59
    %70 = vmatprep.subr.bf16.mxu0 0
    %71 = vmatpush1.bf16.msra.mxu0 0
    %72 = vmatprep.subr.bf16.mxu0 0
    %73 = vmatpush1.bf16.msra.mxu0 0
    %74 = vmatprep.subr.bf16.mxu0 0
    %75 = vmatpush1.bf16.msra.mxu0 0
    %76 = vmatprep.subr.bf16.mxu0 0
    %77 = vmatpush1.bf16.msra.mxu0 0
    %78 = vmatprep.subr.bf16.mxu0 0
    %79 = vmatpush1.bf16.msra.mxu0 0
    %80 = vmatprep.subr.bf16.mxu0 0
    %81 = vmatpush1.bf16.msra.mxu0 0
    %82 = vmatprep.subr.bf16.mxu0 0
    %83 = vmatpush1.bf16.msra.mxu0 0
    %84 = vmatprep.subr.bf16.mxu0 0
    %85 = vmatpush1.bf16.msra.mxu0 0
    %86 = vmatprep.subr.bf16.mxu0 0
    %87 = vmatpush1.bf16.msra.mxu0 0
    %88 = vmatprep.subr.bf16.mxu0 0
    %89 = vmatpush1.bf16.msra.mxu0 0
    %90 = vmatprep.subr.bf16.mxu0 0
    %91 = vmatpush1.bf16.msra.mxu0 0
    %92 = vmatprep.subr.bf16.mxu0 0
    %93 = vmatpush1.bf16.msra.mxu0 0
    %94 = vmatprep.subr.bf16.mxu0 0
    %95 = vmatpush1.bf16.msra.mxu0 0
    %96 = vmatprep.subr.bf16.mxu0 0
    %97 = vmatpush1.bf16.msra.mxu0 0
    %98 = vmatprep.mubr.bf16.mxu0 0
    %99 = vmatmul.mubr.bf16.gmra.mrb[0].mxu0 %v64
    %v100 = vpop.f32.mrb[0].mxu0
    %v101 = vadd.f32 %v48, %v100
    %v102 = vpop.f32.mrb[0].mxu0
    %v103 = vpop.f32.mrb[0].mxu0
    %v104 = vpop.f32.mrb[0].mxu0
    %105 = vdwg.mxu0
    %v106 = vmax.f32 %v101, 0.0
    %v107 = vpack.c.bf16 %v106, %v106
    %v108 = vld [vmem:[%s2] sm:$0xf]
    %v109 = vld [vmem:[%s2 + $0x4] sm:$0xf]
    %v110 = vld [vmem:[%s2 + $0x8] sm:$0xf]
    %v111 = vld [vmem:[%s2 + $0xc] sm:$0xf]
    %v112 = vld [vmem:[%s2 + $0x10] sm:$0xf]
    %v113 = vld [vmem:[%s2 + $0x14] sm:$0xf]
    %v114 = vld [vmem:[%s2 + $0x18] sm:$0xf]
    %v115 = vld [vmem:[%s2 + $0x1c] sm:$0xf]
    %v124 = vunpack.c.l.b16 %v108
    %v125 = vunpack.c.l.b16 %v109
    %v126 = vunpack.c.l.b16 %v110
    %v127 = vunpack.c.l.b16 %v111
    %v128 = vunpack.c.l.b16 %v112
    %v129 = vunpack.c.l.b16 %v113
    %v130 = vunpack.c.l.b16 %v114
    %v131 = vunpack.c.l.b16 %v115
    %v132 = vpack.c.b16 %v125, %v124
    %v133 = vpack.c.b16 %v127, %v126
    %v134 = vpack.c.b16 %v129, %v128
    %v135 = vpack.c.b16 %v131, %v130
    %140 = vrot.lane.b32.xlu0 %v48, 64
    %v141 = vpop.permute.xlu0 %140
    %vm143 = vcmask 523264
    %v145 = vsel %vm143, %v107, 0
    %147 = vmatprep.subr.bf16.mxu0 0
    %148 = vmatpush1.bf16.msra.mxu0 %v132
    %149 = vmatprep.subr.bf16.mxu0 0
    %150 = vmatpush1.bf16.msra.mxu0 %v133
    %151 = vmatprep.subr.bf16.mxu0 0
    %152 = vmatpush1.bf16.msra.mxu0 %v134
    %153 = vmatprep.subr.bf16.mxu0 0
    %154 = vmatpush1.bf16.msra.mxu0 %v135
    %155 = vmatprep.subr.bf16.mxu0 0
    %156 = vmatpush1.bf16.msra.mxu0 0
    %157 = vmatprep.subr.bf16.mxu0 0
    %158 = vmatpush1.bf16.msra.mxu0 0
    %159 = vmatprep.subr.bf16.mxu0 0
    %160 = vmatpush1.bf16.msra.mxu0 0
    %161 = vmatprep.subr.bf16.mxu0 0
    %162 = vmatpush1.bf16.msra.mxu0 0
    %163 = vmatprep.subr.bf16.mxu0 0
    %164 = vmatpush1.bf16.msra.mxu0 0
    %165 = vmatprep.subr.bf16.mxu0 0
    %166 = vmatpush1.bf16.msra.mxu0 0
    %167 = vmatprep.subr.bf16.mxu0 0
    %168 = vmatpush1.bf16.msra.mxu0 0
    %169 = vmatprep.subr.bf16.mxu0 0
    %170 = vmatpush1.bf16.msra.mxu0 0
    %171 = vmatprep.subr.bf16.mxu0 0
    %172 = vmatpush1.bf16.msra.mxu0 0
    %173 = vmatprep.subr.bf16.mxu0 0
    %174 = vmatpush1.bf16.msra.mxu0 0
    %175 = vmatprep.subr.bf16.mxu0 0
    %176 = vmatpush1.bf16.msra.mxu0 0
    %177 = vmatprep.subr.bf16.mxu0 0
    %178 = vmatpush1.bf16.msra.mxu0 0
    %179 = vmatprep.mubr.bf16.mxu0 0
    %180 = vmatmul.mubr.bf16.gmra.mrb[0].mxu0 %v145
    %v181 = vpop.f32.mrb[0].mxu0
    %v182 = vadd.f32 %v141, %v181
    %v183 = vpop.f32.mrb[0].mxu0
    %v184 = vpop.f32.mrb[0].mxu0
    %v185 = vpop.f32.mrb[0].mxu0
    %186 = vdwg.mxu0
    %v187 = vmax.f32 %v182, 0.0
    %v188 = vpack.c.bf16 %v187, %v187
    %v189 = vld [vmem:[%s3] sm:$0xf]
    %v190 = vld [vmem:[%s3 + $0x4] sm:$0xf]
    %v191 = vld [vmem:[%s3 + $0x8] sm:$0xf]
    %v192 = vld [vmem:[%s3 + $0xc] sm:$0xf]
    %v193 = vld [vmem:[%s3 + $0x10] sm:$0xf]
    %v194 = vld [vmem:[%s3 + $0x14] sm:$0xf]
    %v195 = vld [vmem:[%s3 + $0x18] sm:$0xf]
    %v196 = vld [vmem:[%s3 + $0x1c] sm:$0xf]
    %v198 = vlaneseq
    %v199 = vshrl.u32 %v198, 7
    %v200 = vsub.s32 0, %v199
    %v201 = vrot.slane %v38, %v200
    %v211 = vunpack.c.l.b16 %v189
    %v212 = vunpack.c.l.b16 %v190
    %v213 = vunpack.c.l.b16 %v191
    %v214 = vunpack.c.l.b16 %v192
    %v215 = vunpack.c.l.b16 %v193
    %v216 = vunpack.c.l.b16 %v194
    %v217 = vunpack.c.l.b16 %v195
    %v218 = vunpack.c.l.b16 %v196
    %v219 = vpack.c.b16 %v212, %v211
    %v220 = vpack.c.b16 %v214, %v213
    %v221 = vpack.c.b16 %v216, %v215
    %v222 = vpack.c.b16 %v218, %v217
    %v228 = vsel %vm143, %v188, 0
    %230 = vmatprep.subr.bf16.mxu0 0
    %231 = vmatpush1.bf16.msra.mxu0 %v219
    %232 = vmatprep.subr.bf16.mxu0 0
    %233 = vmatpush1.bf16.msra.mxu0 %v220
    %234 = vmatprep.subr.bf16.mxu0 0
    %235 = vmatpush1.bf16.msra.mxu0 %v221
    %236 = vmatprep.subr.bf16.mxu0 0
    %237 = vmatpush1.bf16.msra.mxu0 %v222
    %238 = vmatprep.subr.bf16.mxu0 0
    %239 = vmatpush1.bf16.msra.mxu0 0
    %240 = vmatprep.subr.bf16.mxu0 0
    %241 = vmatpush1.bf16.msra.mxu0 0
    %242 = vmatprep.subr.bf16.mxu0 0
    %243 = vmatpush1.bf16.msra.mxu0 0
    %244 = vmatprep.subr.bf16.mxu0 0
    %245 = vmatpush1.bf16.msra.mxu0 0
    %246 = vmatprep.subr.bf16.mxu0 0
    %247 = vmatpush1.bf16.msra.mxu0 0
    %248 = vmatprep.subr.bf16.mxu0 0
    %249 = vmatpush1.bf16.msra.mxu0 0
    %250 = vmatprep.subr.bf16.mxu0 0
    %251 = vmatpush1.bf16.msra.mxu0 0
    %252 = vmatprep.subr.bf16.mxu0 0
    %253 = vmatpush1.bf16.msra.mxu0 0
    %254 = vmatprep.subr.bf16.mxu0 0
    %255 = vmatpush1.bf16.msra.mxu0 0
    %256 = vmatprep.subr.bf16.mxu0 0
    %257 = vmatpush1.bf16.msra.mxu0 0
    %258 = vmatprep.subr.bf16.mxu0 0
    %259 = vmatpush1.bf16.msra.mxu0 0
    %260 = vmatprep.subr.bf16.mxu0 0
    %261 = vmatpush1.bf16.msra.mxu0 0
    %262 = vmatprep.mubr.bf16.mxu0 0
    %263 = vmatmul.mubr.bf16.gmra.mrb[0].mxu0 %v228
    %v264 = vpop.f32.mrb[0].mxu0
    %v265 = vadd.f32 %v201, %v264
    %v266 = vpop.f32.mrb[0].mxu0
    %v267 = vpop.f32.mrb[0].mxu0
    %v268 = vpop.f32.mrb[0].mxu0
    %269 = vdwg.mxu0
    %v270 = vtanh.pop %v265
    %v271 = vadd.f32 %v270, 1.0
    %v272 = vmul.f32 %v271, 11.0
    %v273 = vadd.f32 %v272, -20.0
    %v274 = vmul.f32 %v273, 1.442695
    %v275 = vpow.pop %v274
    %277 = vrot.lane.b32.xlu0 %v36, 104
    %v278 = vpop.permute.xlu0 %277
    %v280 = vmul.f32 %v275, %v278
    %282 = vrot.lane.b32.xlu0 %v280, 120
    %v283 = vpop.permute.xlu0 %282
    %v285 = vadd.f32 %v265, %v283
    %v286 = vtanh.pop %v285
    %v287 = vmul.f32 %v36, -0.5
    %v288 = vmul.f32 %v287, %v36
    %290 = vrot.lane.b32.xlu0 %v273, 24
    %v291 = vpop.permute.xlu0 %290
    %v293 = vsub.f32 %v288, %v291
    %v294 = vsub.f32 %v293, 0.9189385
    %v295 = vsub.f32 0.6931472, %v285
    %v296 = vmul.f32 %v285, -2.0
    %v297 = vmax.f32 %v296, 0.0
    %v298 = vand.u32 2147483647, %v296
    %v299 = vsub.f32 0.0, %v298
    %v300 = vmul.f32 %v299, 1.442695
    %v301 = vpow.pop %v300
    %v302 = vadd.f32 %v301, 1.0
    %v303 = vlog2.pop %v302
    %v304 = vmul.f32 %v303, 0.6931472
    %v305 = vmul.f32 -0.5, %v301
    %v306 = vadd.f32 %v305, 1.0
    %v307 = vmul.f32 %v306, %v301
    %v308 = vand.u32 2147483647, %v301
    %vm309 = vcmp.lt.f32.partialorder %v308, 0.0004427343
    %v310 = vsel %vm309, %v307, %v304
    %v311 = vadd.f32 %v297, %v310
    %v312 = vsub.f32 %v295, %v311
    %v313 = vmul.f32 %v312, 2.0
    %315 = vrot.lane.b32.xlu0 %v313, 32
    %v316 = vpop.permute.xlu0 %315
    %v318 = vsub.f32 %v294, %v316
    %320 = vrot.lane.b32.xlu0 %v318, 96
    %v321 = vpop.permute.xlu0 %320
    %vm323 = vcmask 64512
    %v324 = vsel %vm323, %v321, 0.0
    %325 = vadd.xlane.f32.xlu0 %v324
    %v326 = vpop.xlane.xlu0 %325
    %327 = vst [vmem:[#allocation5] sm:$0xff] 0.0
    %328 = vst.msk [vmem:[#allocation5] sm:$0xff] %vm323, %v286
    %330 = vrot.lane.b32.xlu0 %v270, 8
    %v331 = vpop.permute.xlu0 %330
    %vm333 = vcmask 130112
    %334 = vst.msk [vmem:[#allocation5] sm:$0xff] %vm333, %v331
    %vm335 = vcmask 138368
    %336 = vst.msk [vmem:[#allocation5] sm:$0xff] %vm335, %v326
    // Predicated region
    $region26: #{tpu_custom_call.1} parent=1 // pred_check
      _
    $region27: #{tpu_custom_call.1} parent=1 // pred_check_branch
      %338 = sbr.rel (0) target = $region29
    $region28: #{tpu_custom_call.1} parent=1 // pred_region
      %s340 = ssub.s32 128, 128
      %341 = vsyncadd [#allocation4], %s340
      %s343 = sshll.u32 [#allocation5], 4
      %s344 = int_to_ptr.vmem [resolvable:$true] %s343
      %346 = dma.vmem_to_hbm [thread:$0]  %s344, 128, %s5, [#allocation4]
    $region29: #{tpu_custom_call.1} parent=1 // pred_fallthru
      _
    // Predicated region
    $region30: #{tpu_custom_call.1} parent=1 // pred_check
      _
    $region31: #{tpu_custom_call.1} parent=1 // pred_check_branch
      %348 = sbr.rel (0) target = $region33
    $region32: #{tpu_custom_call.1} parent=1 // pred_region
      %349 = dma.done [#allocation4], 128
    $region33: #{tpu_custom_call.1} parent=1 // pred_fallthru
      _
    %350 = vsyncpa [#allocation3], 1
    %351 = vsyncpa [#allocation4], 1

</llo_original>
